<compile_context>
chip_gen: v7x
topology: tpu7x:2x2x1
jax: 0.10.0
libtpu: 0.0.40
codegen_flags: <defaults>
</compile_context>

<pallas_src>
import functools

import jax
import jax.numpy as jnp
from jax import lax
from jax.experimental import pallas as pl
from jax.experimental.pallas import tpu as pltpu


def _round_up(x, m):
    return (x + m - 1) // m * m


def _coordconv_kernel(x_ref, w_ref, cb_ref, o_ref, *, W, KH, KW, n_cols):
    """One batch image per grid step.

    x_ref : (1, C_pad, cols_pad)  zero-padded per-image slab, lane = h*W + w
    w_ref : (KH*KW, OC, C_pad)    per-tap weight, tap t = kh*KW + kw
    cb_ref: (OC, n_cols)          conv(coord channels) + bias, batch-invariant
    o_ref : (1, OC, n_cols)       lane-dense output slab (junk cols trimmed later)
    """
    # Start from the precomputed coord-channel contribution (+ conv bias).
    acc = cb_ref[...]                                           # f32 (OC, n_cols)
    # KH*KW accumulating MXU dots; tap (kh, kw) reads the input slab shifted
    # by kh*W + kw lanes (column n <-> pixel (n // W, n % W) of this image).
    for kh in range(KH):
        for kw in range(KW):
            t = kh * KW + kw
            off = kh * W + kw
            tap = x_ref[0, :, off:off + n_cols]                 # (C_pad, n_cols)
            acc = acc + jnp.dot(w_ref[t], tap,
                                preferred_element_type=jnp.float32)
    o_ref[0] = acc.astype(o_ref.dtype)                          # unmasked store


def coordconv(x, weight, bias, *, with_r=False, compute_dtype=jnp.float32):
    """CoordConv forward: AddCoords(x_dim=H, y_dim=W, with_r) -> Conv2d (valid).

    x      : (B, C, H, W) float   (NCHW; H = x_dim, W = y_dim)
    weight : (OC, C + 2 + with_r, KH, KW)
    bias   : (OC,)
    Returns (B, OC, H-KH+1, W-KW+1) float32.   Requires H > 1 and W > 1.
    """
    x = x.astype(jnp.float32)
    weight = weight.astype(jnp.float32)
    bias = bias.astype(jnp.float32)

    B, C, H, W = x.shape
    OC, IC_aug, KH, KW = weight.shape
    n_extra = 2 + (1 if with_r else 0)
    assert IC_aug == C + n_extra, "weight in-channels must be C + 2 (+1 for r)"
    assert H > 1 and W > 1, "AddCoords requires H > 1 and W > 1"
    H_out, W_out = H - KH + 1, W - KW + 1

    T = KH * KW
    C_pad = _round_up(C, 8)                       # full-sublane input tiles
    tail = (KH - 1) * W + (KW - 1)                # max lane shift of a tap
    n_cols = _round_up(H * W, 128)                # output/cb lane width (unmasked)
    cols_pad = _round_up(n_cols + tail, 128)      # input slab lane width

    # --- per-tap weight over the *input* channels: (T, OC, C_pad) -----------
    w_taps = jnp.transpose(weight[:, :C], (2, 3, 0, 1)).reshape(T, OC, C)
    w_taps = jnp.pad(w_taps, ((0, 0), (0, 0), (0, C_pad - C)))

    # --- batch-invariant part: conv(coord channels) + bias ------------------
    # xx varies along W (= y_dim), yy varies along H (= x_dim), as in PyTorch.
    xx = jnp.broadcast_to(jnp.arange(W, dtype=jnp.float32)[None, :], (H, W))
    yy = jnp.broadcast_to(jnp.arange(H, dtype=jnp.float32)[:, None], (H, W))
    xx = xx / (W - 1) * 2.0 - 1.0
    yy = yy / (H - 1) * 2.0 - 1.0
    coords = [xx, yy]
    if with_r:
        coords.append(jnp.sqrt(xx * xx + yy * yy))
    coord_img = jnp.stack(coords, axis=0)[None]                  # (1, n_extra, H, W)
    coord_out = lax.conv_general_dilated(
        coord_img, weight[:, C:], window_strides=(1, 1), padding="VALID",
        dimension_numbers=("NCHW", "OIHW", "NCHW"))[0]           # (OC, H_out, W_out)
    cb_hw = coord_out + bias[:, None, None]
    # Embed into the full (H, W) grid (junk positions trimmed later), flatten,
    # pad lanes to n_cols.  One copy for all batch items.
    cb_full = jnp.zeros((OC, H, W), jnp.float32).at[:, :H_out, :W_out].set(cb_hw)
    cb_flat = jnp.pad(cb_full.reshape(OC, H * W), ((0, 0), (0, n_cols - H * W)))

    # --- per-image lane-dense slab: one reshape (view) + one pad ------------
    x_slab = jnp.pad(x.reshape(B, C, H * W),
                     ((0, 0), (0, C_pad - C), (0, cols_pad - H * W)))

    if compute_dtype != jnp.float32:
        # Pre-cast in the wrapper (not per grid step inside the kernel).
        x_slab = x_slab.astype(compute_dtype)
        w_taps = w_taps.astype(compute_dtype)

    K = T * C
    cost = pl.CostEstimate(
        flops=2 * OC * K * B * H * W,
        transcendentals=0,
        bytes_accessed=(x_slab.size * x_slab.dtype.itemsize
                        + w_taps.size * w_taps.dtype.itemsize
                        + cb_flat.size * 4
                        + B * OC * n_cols * 4))

    kernel = functools.partial(_coordconv_kernel,
                               W=W, KH=KH, KW=KW, n_cols=n_cols)

    out_slab = pl.pallas_call(
        kernel,
        out_shape=jax.ShapeDtypeStruct((B, OC, n_cols), jnp.float32),
        grid=(B,),
        in_specs=[
            pl.BlockSpec((1, C_pad, cols_pad), lambda b: (b, 0, 0)),  # x slab
            pl.BlockSpec((T, OC, C_pad), lambda b: (0, 0, 0)),        # weights (resident)
            pl.BlockSpec((OC, n_cols), lambda b: (0, 0)),             # cb (resident)
        ],
        out_specs=pl.BlockSpec((1, OC, n_cols), lambda b: (b, 0, 0)),
        compiler_params=pltpu.CompilerParams(
            dimension_semantics=("parallel",)),   # independent per-image blocks
        cost_estimate=cost,
    )(x_slab, w_taps, cb_flat)                                   # (B, OC, n_cols)

    # --- trim junk columns (h >= H_out or w >= W_out), restore NCHW ---------
    out = out_slab[:, :, :H * W].reshape(B, OC, H, W)[:, :, :H_out, :W_out]
    return out


def _reference(x, weight, bias, *, with_r=False):
    """Pure-JAX reference mirroring the PyTorch CoordConv module (NCHW)."""
    B, C, H, W = x.shape
    xx = jnp.broadcast_to(jnp.arange(W, dtype=jnp.float32)[None, :], (H, W))
    yy = jnp.broadcast_to(jnp.arange(H, dtype=jnp.float32)[:, None], (H, W))
    xx = xx / (W - 1) * 2.0 - 1.0
    yy = yy / (H - 1) * 2.0 - 1.0
    xx = jnp.broadcast_to(xx[None, None], (B, 1, H, W))
    yy = jnp.broadcast_to(yy[None, None], (B, 1, H, W))
    chans = [x, xx, yy]
    if with_r:
        chans.append(jnp.sqrt(xx * xx + yy * yy))
    aug = jnp.concatenate(chans, axis=1)
    out = lax.conv_general_dilated(
        aug, weight, window_strides=(1, 1), padding="VALID",
        dimension_numbers=("NCHW", "OIHW", "NCHW"))
    return out + bias.reshape(1, -1, 1, 1)


if __name__ == "__main__":
    # Module config: CoordConv(x_dim=16, y_dim=16, with_r, in_channels=C+2(+1),
    #                          out_channels=8, kernel_size=3)
    B, C, H, W = 2, 4, 16, 16
    OC, KH, KW = 8, 3, 3

    key = jax.random.PRNGKey(0)
    for with_r in (False, True):
        IC_aug = C + 2 + (1 if with_r else 0)
        kx, kw_, kb, key = jax.random.split(key, 4)
        x = jax.random.normal(kx, (B, C, H, W), dtype=jnp.float32)
        weight = jax.random.normal(kw_, (OC, IC_aug, KH, KW), dtype=jnp.float32) * 0.1
        bias = jax.random.normal(kb, (OC,), dtype=jnp.float32) * 0.1

        out = jax.block_until_ready(coordconv(x, weight, bias, with_r=with_r))
        ref = _reference(x, weight, bias, with_r=with_r)

        assert out.shape == (B, OC, H - KH + 1, W - KW + 1)
        assert jnp.allclose(out, ref, atol=1e-4, rtol=1e-4), \
            f"mismatch vs reference (with_r={with_r})"

    print("KERNEL_OK")
</pallas_src>

<mosaic_0001>
module attributes {stable_mosaic.version = 11 : i64} {
  func.func @_coordconv_kernel(%arg0: i32, %arg1: memref<1x8x384xf32, #tpu.memory_space<vmem>>, %arg2: memref<9x8x8xf32, #tpu.memory_space<vmem>>, %arg3: memref<8x256xf32, #tpu.memory_space<vmem>>, %arg4: memref<1x8x256xf32, #tpu.memory_space<vmem>>) attributes {dimension_semantics = [#tpu.dimension_semantics<parallel>], iteration_bounds = array<i64: 2>, scalar_prefetch = 0 : i64, scratch_operands = 0 : i64, tpu.core_type = #tpu.core_type<tc>, window_params = [{transform_indices = @transform_0, window_bounds = array<i64: 1, 8, 384>}, {pipeline_mode = #tpu.pipeline_mode<synchronous>, transform_indices = @transform_1, window_bounds = array<i64: 9, 8, 8>}, {pipeline_mode = #tpu.pipeline_mode<synchronous>, transform_indices = @transform_2, window_bounds = array<i64: 8, 256>}, {transform_indices = @transform_3, window_bounds = array<i64: 1, 8, 256>}]} {
    %c0 = arith.constant 0 : index
    %c0_0 = arith.constant 0 : index
    %0 = vector.load %arg3[%c0, %c0_0] : memref<8x256xf32, #tpu.memory_space<vmem>>, vector<8x256xf32>
    %c0_1 = arith.constant 0 : index
    %c0_2 = arith.constant 0 : index
    %c0_3 = arith.constant 0 : index
    %1 = vector.load %arg1[%c0_1, %c0_2, %c0_3] : memref<1x8x384xf32, #tpu.memory_space<vmem>>, vector<1x8x256xf32>
    %2 = vector.shape_cast %1 : vector<1x8x256xf32> to vector<8x256xf32>
    %c0_4 = arith.constant 0 : index
    %c0_5 = arith.constant 0 : index
    %c0_6 = arith.constant 0 : index
    %3 = vector.load %arg2[%c0_4, %c0_5, %c0_6] : memref<9x8x8xf32, #tpu.memory_space<vmem>>, vector<1x8x8xf32>
    %4 = vector.shape_cast %3 : vector<1x8x8xf32> to vector<8x8xf32>
    %cst = arith.constant dense<0.000000e+00> : vector<8x256xf32>
    %5 = tpu.matmul %4, %2, %cst {dimension_numbers = #tpu.dot_dimension_numbers<[1], [0], [0], [1], [0, 0, 1, 1], [], []>} : vector<8x8xf32>, vector<8x256xf32>, vector<8x256xf32> -> vector<8x256xf32>
    %6 = arith.addf %0, %5 : vector<8x256xf32>
    %c0_7 = arith.constant 0 : index
    %c0_8 = arith.constant 0 : index
    %c1 = arith.constant 1 : index
    %7 = vector.load %arg1[%c0_7, %c0_8, %c1] : memref<1x8x384xf32, #tpu.memory_space<vmem>>, vector<1x8x256xf32>
    %8 = vector.shape_cast %7 : vector<1x8x256xf32> to vector<8x256xf32>
    %c1_9 = arith.constant 1 : index
    %c0_10 = arith.constant 0 : index
    %c0_11 = arith.constant 0 : index
    %9 = vector.load %arg2[%c1_9, %c0_10, %c0_11] : memref<9x8x8xf32, #tpu.memory_space<vmem>>, vector<1x8x8xf32>
    %10 = vector.shape_cast %9 : vector<1x8x8xf32> to vector<8x8xf32>
    %cst_12 = arith.constant dense<0.000000e+00> : vector<8x256xf32>
    %11 = tpu.matmul %10, %8, %cst_12 {dimension_numbers = #tpu.dot_dimension_numbers<[1], [0], [0], [1], [0, 0, 1, 1], [], []>} : vector<8x8xf32>, vector<8x256xf32>, vector<8x256xf32> -> vector<8x256xf32>
    %12 = arith.addf %6, %11 : vector<8x256xf32>
    %c0_13 = arith.constant 0 : index
    %c0_14 = arith.constant 0 : index
    %c2 = arith.constant 2 : index
    %13 = vector.load %arg1[%c0_13, %c0_14, %c2] : memref<1x8x384xf32, #tpu.memory_space<vmem>>, vector<1x8x256xf32>
    %14 = vector.shape_cast %13 : vector<1x8x256xf32> to vector<8x256xf32>
    %c2_15 = arith.constant 2 : index
    %c0_16 = arith.constant 0 : index
    %c0_17 = arith.constant 0 : index
    %15 = vector.load %arg2[%c2_15, %c0_16, %c0_17] : memref<9x8x8xf32, #tpu.memory_space<vmem>>, vector<1x8x8xf32>
    %16 = vector.shape_cast %15 : vector<1x8x8xf32> to vector<8x8xf32>
    %cst_18 = arith.constant dense<0.000000e+00> : vector<8x256xf32>
    %17 = tpu.matmul %16, %14, %cst_18 {dimension_numbers = #tpu.dot_dimension_numbers<[1], [0], [0], [1], [0, 0, 1, 1], [], []>} : vector<8x8xf32>, vector<8x256xf32>, vector<8x256xf32> -> vector<8x256xf32>
    %18 = arith.addf %12, %17 : vector<8x256xf32>
    %c0_19 = arith.constant 0 : index
    %c0_20 = arith.constant 0 : index
    %c16 = arith.constant 16 : index
    %19 = vector.load %arg1[%c0_19, %c0_20, %c16] : memref<1x8x384xf32, #tpu.memory_space<vmem>>, vector<1x8x256xf32>
    %20 = vector.shape_cast %19 : vector<1x8x256xf32> to vector<8x256xf32>
    %c3 = arith.constant 3 : index
    %c0_21 = arith.constant 0 : index
    %c0_22 = arith.constant 0 : index
    %21 = vector.load %arg2[%c3, %c0_21, %c0_22] : memref<9x8x8xf32, #tpu.memory_space<vmem>>, vector<1x8x8xf32>
    %22 = vector.shape_cast %21 : vector<1x8x8xf32> to vector<8x8xf32>
    %cst_23 = arith.constant dense<0.000000e+00> : vector<8x256xf32>
    %23 = tpu.matmul %22, %20, %cst_23 {dimension_numbers = #tpu.dot_dimension_numbers<[1], [0], [0], [1], [0, 0, 1, 1], [], []>} : vector<8x8xf32>, vector<8x256xf32>, vector<8x256xf32> -> vector<8x256xf32>
    %24 = arith.addf %18, %23 : vector<8x256xf32>
    %c0_24 = arith.constant 0 : index
    %c0_25 = arith.constant 0 : index
    %c17 = arith.constant 17 : index
    %25 = vector.load %arg1[%c0_24, %c0_25, %c17] : memref<1x8x384xf32, #tpu.memory_space<vmem>>, vector<1x8x256xf32>
    %26 = vector.shape_cast %25 : vector<1x8x256xf32> to vector<8x256xf32>
    %c4 = arith.constant 4 : index
    %c0_26 = arith.constant 0 : index
    %c0_27 = arith.constant 0 : index
    %27 = vector.load %arg2[%c4, %c0_26, %c0_27] : memref<9x8x8xf32, #tpu.memory_space<vmem>>, vector<1x8x8xf32>
    %28 = vector.shape_cast %27 : vector<1x8x8xf32> to vector<8x8xf32>
    %cst_28 = arith.constant dense<0.000000e+00> : vector<8x256xf32>
    %29 = tpu.matmul %28, %26, %cst_28 {dimension_numbers = #tpu.dot_dimension_numbers<[1], [0], [0], [1], [0, 0, 1, 1], [], []>} : vector<8x8xf32>, vector<8x256xf32>, vector<8x256xf32> -> vector<8x256xf32>
    %30 = arith.addf %24, %29 : vector<8x256xf32>
    %c0_29 = arith.constant 0 : index
    %c0_30 = arith.constant 0 : index
    %c18 = arith.constant 18 : index
    %31 = vector.load %arg1[%c0_29, %c0_30, %c18] : memref<1x8x384xf32, #tpu.memory_space<vmem>>, vector<1x8x256xf32>
    %32 = vector.shape_cast %31 : vector<1x8x256xf32> to vector<8x256xf32>
    %c5 = arith.constant 5 : index
    %c0_31 = arith.constant 0 : index
    %c0_32 = arith.constant 0 : index
    %33 = vector.load %arg2[%c5, %c0_31, %c0_32] : memref<9x8x8xf32, #tpu.memory_space<vmem>>, vector<1x8x8xf32>
    %34 = vector.shape_cast %33 : vector<1x8x8xf32> to vector<8x8xf32>
    %cst_33 = arith.constant dense<0.000000e+00> : vector<8x256xf32>
    %35 = tpu.matmul %34, %32, %cst_33 {dimension_numbers = #tpu.dot_dimension_numbers<[1], [0], [0], [1], [0, 0, 1, 1], [], []>} : vector<8x8xf32>, vector<8x256xf32>, vector<8x256xf32> -> vector<8x256xf32>
    %36 = arith.addf %30, %35 : vector<8x256xf32>
    %c0_34 = arith.constant 0 : index
    %c0_35 = arith.constant 0 : index
    %c32 = arith.constant 32 : index
    %37 = vector.load %arg1[%c0_34, %c0_35, %c32] : memref<1x8x384xf32, #tpu.memory_space<vmem>>, vector<1x8x256xf32>
    %38 = vector.shape_cast %37 : vector<1x8x256xf32> to vector<8x256xf32>
    %c6 = arith.constant 6 : index
    %c0_36 = arith.constant 0 : index
    %c0_37 = arith.constant 0 : index
    %39 = vector.load %arg2[%c6, %c0_36, %c0_37] : memref<9x8x8xf32, #tpu.memory_space<vmem>>, vector<1x8x8xf32>
    %40 = vector.shape_cast %39 : vector<1x8x8xf32> to vector<8x8xf32>
    %cst_38 = arith.constant dense<0.000000e+00> : vector<8x256xf32>
    %41 = tpu.matmul %40, %38, %cst_38 {dimension_numbers = #tpu.dot_dimension_numbers<[1], [0], [0], [1], [0, 0, 1, 1], [], []>} : vector<8x8xf32>, vector<8x256xf32>, vector<8x256xf32> -> vector<8x256xf32>
    %42 = arith.addf %36, %41 : vector<8x256xf32>
    %c0_39 = arith.constant 0 : index
    %c0_40 = arith.constant 0 : index
    %c33 = arith.constant 33 : index
    %43 = vector.load %arg1[%c0_39, %c0_40, %c33] : memref<1x8x384xf32, #tpu.memory_space<vmem>>, vector<1x8x256xf32>
    %44 = vector.shape_cast %43 : vector<1x8x256xf32> to vector<8x256xf32>
    %c7 = arith.constant 7 : index
    %c0_41 = arith.constant 0 : index
    %c0_42 = arith.constant 0 : index
    %45 = vector.load %arg2[%c7, %c0_41, %c0_42] : memref<9x8x8xf32, #tpu.memory_space<vmem>>, vector<1x8x8xf32>
    %46 = vector.shape_cast %45 : vector<1x8x8xf32> to vector<8x8xf32>
    %cst_43 = arith.constant dense<0.000000e+00> : vector<8x256xf32>
    %47 = tpu.matmul %46, %44, %cst_43 {dimension_numbers = #tpu.dot_dimension_numbers<[1], [0], [0], [1], [0, 0, 1, 1], [], []>} : vector<8x8xf32>, vector<8x256xf32>, vector<8x256xf32> -> vector<8x256xf32>
    %48 = arith.addf %42, %47 : vector<8x256xf32>
    %c0_44 = arith.constant 0 : index
    %c0_45 = arith.constant 0 : index
    %c34 = arith.constant 34 : index
    %49 = vector.load %arg1[%c0_44, %c0_45, %c34] : memref<1x8x384xf32, #tpu.memory_space<vmem>>, vector<1x8x256xf32>
    %50 = vector.shape_cast %49 : vector<1x8x256xf32> to vector<8x256xf32>
    %c8 = arith.constant 8 : index
    %c0_46 = arith.constant 0 : index
    %c0_47 = arith.constant 0 : index
    %51 = vector.load %arg2[%c8, %c0_46, %c0_47] : memref<9x8x8xf32, #tpu.memory_space<vmem>>, vector<1x8x8xf32>
    %52 = vector.shape_cast %51 : vector<1x8x8xf32> to vector<8x8xf32>
    %cst_48 = arith.constant dense<0.000000e+00> : vector<8x256xf32>
    %53 = tpu.matmul %52, %50, %cst_48 {dimension_numbers = #tpu.dot_dimension_numbers<[1], [0], [0], [1], [0, 0, 1, 1], [], []>} : vector<8x8xf32>, vector<8x256xf32>, vector<8x256xf32> -> vector<8x256xf32>
    %54 = arith.addf %48, %53 : vector<8x256xf32>
    %c0_49 = arith.constant 0 : index
    %c0_50 = arith.constant 0 : index
    %c0_51 = arith.constant 0 : index
    %55 = vector.load %arg4[%c0_49, %c0_50, %c0_51] : memref<1x8x256xf32, #tpu.memory_space<vmem>>, vector<1x8x256xf32>
    %56 = vector.shape_cast %55 : vector<1x8x256xf32> to vector<8x256xf32>
    %57 = vector.shape_cast %54 : vector<8x256xf32> to vector<1x8x256xf32>
    tpu.vector_store %arg4[%c0_49, %c0_50, %c0_51], %57 {strides = array<i32>} : memref<1x8x256xf32, #tpu.memory_space<vmem>>, vector<1x8x256xf32>,
    return
  }
  func.func @transform_0(%arg0: i32) -> (i32, i32, i32) {
    %c0_i32 = arith.constant 0 : i32
    %c0_i32_0 = arith.constant 0 : i32
    %c0_i32_1 = arith.constant 0 : i32
    return %arg0, %c0_i32, %c0_i32_0 : i32, i32, i32
  }
  func.func @transform_1(%arg0: i32) -> (i32, i32, i32) {
    %c0_i32 = arith.constant 0 : i32
    %c0_i32_0 = arith.constant 0 : i32
    %c0_i32_1 = arith.constant 0 : i32
    %c0_i32_2 = arith.constant 0 : i32
    return %c0_i32, %c0_i32_0, %c0_i32_1 : i32, i32, i32
  }
  func.func @transform_2(%arg0: i32) -> (i32, i32) {
    %c0_i32 = arith.constant 0 : i32
    %c0_i32_0 = arith.constant 0 : i32
    %c0_i32_1 = arith.constant 0 : i32
    return %c0_i32, %c0_i32_0 : i32, i32
  }
  func.func @transform_3(%arg0: i32) -> (i32, i32, i32) {
    %c0_i32 = arith.constant 0 : i32
    %c0_i32_0 = arith.constant 0 : i32
    %c0_i32_1 = arith.constant 0 : i32
    return %arg0, %c0_i32, %c0_i32_0 : i32, i32, i32
  }
}

</mosaic_0001>

<llo_original>
// kernel: tpu_custom_call.1
$region0: #{tpu_custom_call.1}
  #allocation0 [shape = 'u32[]', space=smem, size = 0x4, offset = 0x4, fixed_abs, tag = 'smem constant byte address 0x4 - core index']
  #allocation1 [shape = 'u32[144,128]{1,0:T(1,128)}', space=vmem, size = 0x12000, scoped, tag = 'internal scratch']
  %s0 = inlined_call_operand.vmem [shape: f32[2,8,384], index: 0, kind: input, shape index: {}]
  %s1 = inlined_call_operand.vmem [shape: f32[9,8,8], index: 1, kind: input, shape index: {}]
  %s2 = inlined_call_operand.vmem [shape: f32[8,256], index: 2, kind: input, shape index: {}]
  %s3 = inlined_call_operand.hbm [shape: f32[2,8,256], index: 3, kind: output, shape index: {}]
  %s4 = sld [smem:[#allocation0]]
  $region45: #{tpu_custom_call.1} parent=0
    _
  %s6 = ssub.s32 1, %s4
  %s7 = scalar_select 0, %s6, %s4
  $region1: #{tpu_custom_call.1} parent=0
    #allocation2 [shape = 'u8[16384]{0}', space=vmem, size = 0x4000, scoped, tag = 'output window, operand 0']
    #allocation3 [shape = 's32[2]{0}', space=sflag, size = 0x8, scoped, tag = 'scoped memory for tpu_custom_call.1']
    %8 = vsyncpa [#allocation3], 0
    %s9 = scalar_lea.sflag [#allocation3], 1
    %10 = vsyncpa %s9, 0
    loop: start=0, step=1, limit=4
    $region2: #{tpu_custom_call.1} parent=1 // loop_pre_header
      _
    $region3: #{tpu_custom_call.1} parent=1 // loop_header
      %s12 = sphi 0, %s16
      %p13 = scmp.ge.s32.totalorder %s12, 4
      %s22 = sphi 0, %s24
      %s25 = sphi 0, %s22
      %s26 = sphi 0, %s25
      %s42 = sphi 0, %s26
      %s46 = sphi 0, %s46
      %s48 = sphi 0, %s46
      %s49 = sphi 0, %s48
      %s63 = sphi 0, %s49
      %s67 = sphi 0, %s67
      %s69 = sphi 0, %s67
      %s70 = sphi 0, %s69
      %s84 = sphi 0, %s70
      %s90 = sphi 0, %s92
      %s93 = sphi 0, %s90
      %s94 = sphi 0, %s93
      %s110 = sphi 0, %s94
    $region4: #{tpu_custom_call.1} parent=1 // loop_header_branch
      %15 = sbr.rel (%p13) target = $region8
    $region5: #{tpu_custom_call.1} parent=1 // loop_body
      %s17 = ssub.s32 %s12, 1
      %s18 = ssub.s32 %s12, 2
      %s19 = sadd.s32 %s12, 1
      %s20 = ssub.s32 %s12, %s19
      %p21 = scmp.eq.s32.totalorder %s20, 0
      %s23 = sadd.s32 %s22, 1
      %s24 = scalar_select %p21, %s22, %s23
      %p27 = pneg %p21
      %p28 = scmp.eq.s32.totalorder %s12, 1
      %p29 = por %p27, %p28
      %p30 = scmp.ne.s32.totalorder %s22, %s25
      %p31 = scmp.eq.s32.totalorder %s12, 0
      %p32 = por %p30, %p31
      %p33 = scmp.ne.s32.totalorder %s22, %s25
      %p34 = scmp.eq.s32.totalorder %s17, 1
      %p35 = por %p33, %p34
      %p36 = scmp.ne.s32.totalorder %s25, %s26
      %p37 = scmp.eq.s32.totalorder %s17, 0
      %p38 = por %p36, %p37
      %p39 = scmp.ne.s32.totalorder %s25, %s26
      %p40 = scmp.eq.s32.totalorder %s18, 1
      %p41 = por %p39, %p40
      %p43 = scmp.ne.s32.totalorder %s26, %s42
      %p44 = scmp.eq.s32.totalorder %s18, 0
      %p45 = por %p43, %p44
      %s47 = sadd.s32 %s46, 1
      %p50 = scmp.eq.s32.totalorder %s12, 1
      %p51 = scmp.ne.s32.totalorder %s46, %s48
      %p52 = scmp.eq.s32.totalorder %s12, 0
      %p53 = por %p51, %p52
      %p54 = scmp.ne.s32.totalorder %s46, %s48
      %p55 = scmp.eq.s32.totalorder %s17, 1
      %p56 = por %p54, %p55
      %p57 = scmp.ne.s32.totalorder %s48, %s49
      %p58 = scmp.eq.s32.totalorder %s17, 0
      %p59 = por %p57, %p58
      %p60 = scmp.ne.s32.totalorder %s48, %s49
      %p61 = scmp.eq.s32.totalorder %s18, 1
      %p62 = por %p60, %p61
      %p64 = scmp.ne.s32.totalorder %s49, %s63
      %p65 = scmp.eq.s32.totalorder %s18, 0
      %p66 = por %p64, %p65
      %s68 = sadd.s32 %s67, 1
      %p71 = scmp.eq.s32.totalorder %s12, 1
      %p72 = scmp.ne.s32.totalorder %s67, %s69
      %p73 = scmp.eq.s32.totalorder %s12, 0
      %p74 = por %p72, %p73
      %p75 = scmp.ne.s32.totalorder %s67, %s69
      %p76 = scmp.eq.s32.totalorder %s17, 1
      %p77 = por %p75, %p76
      %p78 = scmp.ne.s32.totalorder %s69, %s70
      %p79 = scmp.eq.s32.totalorder %s17, 0
      %p80 = por %p78, %p79
      %p81 = scmp.ne.s32.totalorder %s69, %s70
      %p82 = scmp.eq.s32.totalorder %s18, 1
      %p83 = por %p81, %p82
      %p85 = scmp.ne.s32.totalorder %s70, %s84
      %p86 = scmp.eq.s32.totalorder %s18, 0
      %p87 = por %p85, %p86
      %s88 = ssub.s32 %s12, %s19
      %p89 = scmp.eq.s32.totalorder %s88, 0
      %s91 = sadd.s32 %s90, 1
      %s92 = scalar_select %p89, %s90, %s91
      %p95 = pneg %p89
      %p96 = scmp.eq.s32.totalorder %s12, 1
      %p97 = por %p95, %p96
      %p98 = scmp.ne.s32.totalorder %s90, %s93
      %p99 = scmp.eq.s32.totalorder %s12, 0
      %p100 = por %p98, %p99
      %p101 = scmp.ne.s32.totalorder %s90, %s93
      %p102 = scmp.eq.s32.totalorder %s17, 1
      %p103 = por %p101, %p102
      %p104 = scmp.ne.s32.totalorder %s93, %s94
      %p105 = scmp.eq.s32.totalorder %s17, 0
      %p106 = por %p104, %p105
      %p107 = scmp.ne.s32.totalorder %s93, %s94
      %p108 = scmp.eq.s32.totalorder %s18, 1
      %p109 = por %p107, %p108
      %p111 = scmp.ne.s32.totalorder %s94, %s110
      %p112 = scmp.eq.s32.totalorder %s18, 0
      %p113 = por %p111, %p112
      %p114 = scmp.le.s32.totalorder 1, %s12
      %p115 = scmp.lt.s32.totalorder %s12, 3
      %p116 = pnand %p114, %p115
      %p117 = pneg %p116
      // Predicated region
      $region9: #{tpu_custom_call.1} parent=5 // pred_check
        _
      $region10: #{tpu_custom_call.1} parent=5 // pred_check_branch
        %119 = sbr.rel (%p116) target = $region12
      $region11: #{tpu_custom_call.1} parent=5 // pred_region
        %s120 = ssub.s32 %s12, 1
        // Predicated region
        $region13: #{tpu_custom_call.1} parent=11 // pred_check
          %p121 = pneg %p59
        $region14: #{tpu_custom_call.1} parent=11 // pred_check_branch
          %123 = sbr.rel (%p121) target = $region16
        $region15: #{tpu_custom_call.1} parent=11 // pred_region
          _
        $region16: #{tpu_custom_call.1} parent=11 // pred_fallthru
          _
        // Predicated region
        $region17: #{tpu_custom_call.1} parent=11 // pred_check
          %p124 = pneg %p80
        $region18: #{tpu_custom_call.1} parent=11 // pred_check_branch
          %126 = sbr.rel (%p124) target = $region20
        $region19: #{tpu_custom_call.1} parent=11 // pred_region
          _
        $region20: #{tpu_custom_call.1} parent=11 // pred_fallthru
          _
      $region12: #{tpu_custom_call.1} parent=5 // pred_fallthru
        _
      %p127 = scmp.lt.s32.totalorder %s12, 2
      // Predicated region
      $region21: #{tpu_custom_call.1} parent=5 // pred_check
        %p128 = pneg %p127
      $region22: #{tpu_custom_call.1} parent=5 // pred_check_branch
        %130 = sbr.rel (%p128) target = $region24
      $region23: #{tpu_custom_call.1} parent=5 // pred_region
        // Predicated region
        $region25: #{tpu_custom_call.1} parent=23 // pred_check
          %p131 = pneg %p32
        $region26: #{tpu_custom_call.1} parent=23 // pred_check_branch
          %133 = sbr.rel (%p131) target = $region28
        $region27: #{tpu_custom_call.1} parent=23 // pred_region
          %p134 = scmp.lt.s32.totalorder %s12, 1
          %s135 = scalar_select %p134, %s12, 1
          %s136 = smul.addr %s135, 3
          %s137 = smul.addr %s136, 8
          %s138 = scalar_lea.vmem %s0, %s137
        $region28: #{tpu_custom_call.1} parent=23 // pred_fallthru
          _
      $region24: #{tpu_custom_call.1} parent=5 // pred_fallthru
        _
      %p139 = scmp.le.s32.totalorder 1, %s12
      %p140 = scmp.lt.s32.totalorder %s12, 3
      %p141 = pnand %p139, %p140
      %p142 = pneg %p141
      // Predicated region
      $region29: #{tpu_custom_call.1} parent=5 // pred_check
        _
      $region30: #{tpu_custom_call.1} parent=5 // pred_check_branch
        %144 = sbr.rel (%p141) target = $region32
      $region31: #{tpu_custom_call.1} parent=5 // pred_region
        %s145 = ssub.s32 %s12, 1
        %p146 = scmp.lt.s32.totalorder %s17, 1
        %s147 = scalar_select %p146, %s17, 1
        %s148 = smul.addr %s147, 3
        %s149 = smul.addr %s148, 8
        %s150 = scalar_lea.vmem %s0, %s149
        %p151 = pneg %p38
        %p152 = pneg %p35
        %p153 = pneg %p59
        %p154 = pneg %p56
        %p155 = pneg %p80
        %p156 = pneg %p77
        %p157 = pneg %p106
        %p158 = pneg %p103
        %s159 = sand.u32 %s93, 1
        %s160 = scalar_lea.sflag [#allocation3], %s159
        %s161 = sand.u32 %s93, 1
        %s162 = smul.addr %s161, 16
        %s163 = scalar_lea.vmem [#allocation2], %s162
        %p164 = scmp.lt.s32.totalorder %s17, 1
        %s165 = scalar_select %p164, %s17, 1
        %s166 = smul.addr %s165, 3
        %s167 = smul.addr %s166, 8
        %s168 = scalar_lea.vmem %s0, %s167
        %v169 = vld [vmem:[%s2] sm:$0xff]
        %v170 = vld [vmem:[%s2 + $0x8] sm:$0xff]
        %v171 = vld [vmem:[%s168] sm:$0xff]
        %v172 = vld [vmem:[%s168 + $0x8] sm:$0xff]
        %v173 = vld [vmem:[%s1] sm:$0xff]
        %vm174 = vcmask 64512
        %v176 = vsel %vm174, %v173, 0
        %178 = vmatprep.subr.mxu0 %v172
        %179 = vmatpush1.msra.mxu0 %v171
        %180 = vmatprep.subr.mxu0 0.0
        %181 = vmatpush1.msra.mxu0 0.0
        %182 = vmatprep.subr.mxu0 0.0
        %183 = vmatpush1.msra.mxu0 0.0
        %184 = vmatprep.subr.mxu0 0.0
        %185 = vmatpush1.msra.mxu0 0.0
        %186 = vmatprep.subr.mxu0 0.0
        %187 = vmatpush1.msra.mxu0 0.0
        %188 = vmatprep.subr.mxu0 0.0
        %189 = vmatpush1.msra.mxu0 0.0
        %190 = vmatprep.subr.mxu0 0.0
        %191 = vmatpush1.msra.mxu0 0.0
        %192 = vmatprep.subr.mxu0 0.0
        %193 = vmatpush1.msra.mxu0 0.0
        %194 = vmatprep.subr.mxu0 0.0
        %195 = vmatpush1.msra.mxu0 0.0
        %196 = vmatprep.subr.mxu0 0.0
        %197 = vmatpush1.msra.mxu0 0.0
        %198 = vmatprep.subr.mxu0 0.0
        %199 = vmatpush1.msra.mxu0 0.0
        %200 = vmatprep.subr.mxu0 0.0
        %201 = vmatpush1.msra.mxu0 0.0
        %202 = vmatprep.subr.mxu0 0.0
        %203 = vmatpush1.msra.mxu0 0.0
        %204 = vmatprep.subr.mxu0 0.0
        %205 = vmatpush1.msra.mxu0 0.0
        %206 = vmatprep.subr.mxu0 0.0
        %207 = vmatpush1.msra.mxu0 0.0
        %208 = vmatprep.subr.mxu0 0.0
        %209 = vmatpush1.msra.mxu0 0.0
        %210 = vmatprep.subr.mxu0 0.0
        %211 = vmatpush1.msra.mxu0 0.0
        %212 = vmatprep.subr.mxu0 0.0
        %213 = vmatpush1.msra.mxu0 0.0
        %214 = vmatprep.subr.mxu0 0.0
        %215 = vmatpush1.msra.mxu0 0.0
        %216 = vmatprep.subr.mxu0 0.0
        %217 = vmatpush1.msra.mxu0 0.0
        %218 = vmatprep.subr.mxu0 0.0
        %219 = vmatpush1.msra.mxu0 0.0
        %220 = vmatprep.subr.mxu0 0.0
        %221 = vmatpush1.msra.mxu0 0.0
        %222 = vmatprep.subr.mxu0 0.0
        %223 = vmatpush1.msra.mxu0 0.0
        %224 = vmatprep.subr.mxu0 0.0
        %225 = vmatpush1.msra.mxu0 0.0
        %226 = vmatprep.subr.mxu0 0.0
        %227 = vmatpush1.msra.mxu0 0.0
        %228 = vmatprep.subr.mxu0 0.0
        %229 = vmatpush1.msra.mxu0 0.0
        %230 = vmatprep.subr.mxu0 0.0
        %231 = vmatpush1.msra.mxu0 0.0
        %232 = vmatprep.subr.mxu0 0.0
        %233 = vmatpush1.msra.mxu0 0.0
        %234 = vmatprep.subr.mxu0 0.0
        %235 = vmatpush1.msra.mxu0 0.0
        %236 = vmatprep.subr.mxu0 0.0
        %237 = vmatpush1.msra.mxu0 0.0
        %238 = vmatprep.subr.mxu0 0.0
        %239 = vmatpush1.msra.mxu0 0.0
        %240 = vmatprep.subr.mxu0 0.0
        %241 = vmatpush1.msra.mxu0 0.0
        %242 = vmatprep.mubr.f32.mxu0 0.0
        %243 = vmatmul.mubr.f32.gmra.mrb[0].mxu0 %v176
        %v244 = vpop.f32.mrb[0].mxu0
        %v245 = vadd.f32 0.0, %v244
        %v246 = vpop.f32.mrb[0].mxu0
        %v247 = vadd.f32 0.0, %v246
        %248 = vdwg.mxu0
        %v249 = vadd.f32 %v169, %v245
        %v250 = vadd.f32 %v170, %v247
        %v251 = vld [vmem:[%s168] sm:$0xff]
        %v252 = vld [vmem:[%s168 + $0x8] sm:$0xff]
        %v253 = vld [vmem:[%s168 + $0x10] sm:$0xff]
        %s254 = scalar_lea.vmem %s1, 8
        %v255 = vld [vmem:[%s254] sm:$0xff]
        %259 = vrot.lane.b32.xlu0 %v251, 127
        %v260 = vpop.permute.xlu0 %259
        %261 = vrot.lane.b32.xlu0 %v252, 127
        %v262 = vpop.permute.xlu0 %261
        %263 = vrot.lane.b32.xlu0 %v253, 127
        %v264 = vpop.permute.xlu0 %263
        %vm265 = vcmask 1039360
        %v266 = vsel %vm265, %v260, %v262
        %v267 = vsel %vm265, %v262, %v264
        %v271 = vsel %vm174, %v255, 0
        %273 = vmatprep.subr.mxu0 %v267
        %274 = vmatpush1.msra.mxu0 %v266
        %275 = vmatprep.subr.mxu0 0.0
        %276 = vmatpush1.msra.mxu0 0.0
        %277 = vmatprep.subr.mxu0 0.0
        %278 = vmatpush1.msra.mxu0 0.0
        %279 = vmatprep.subr.mxu0 0.0
        %280 = vmatpush1.msra.mxu0 0.0
        %281 = vmatprep.subr.mxu0 0.0
        %282 = vmatpush1.msra.mxu0 0.0
        %283 = vmatprep.subr.mxu0 0.0
        %284 = vmatpush1.msra.mxu0 0.0
        %285 = vmatprep.subr.mxu0 0.0
        %286 = vmatpush1.msra.mxu0 0.0
        %287 = vmatprep.subr.mxu0 0.0
        %288 = vmatpush1.msra.mxu0 0.0
        %289 = vmatprep.subr.mxu0 0.0
        %290 = vmatpush1.msra.mxu0 0.0
        %291 = vmatprep.subr.mxu0 0.0
        %292 = vmatpush1.msra.mxu0 0.0
        %293 = vmatprep.subr.mxu0 0.0
        %294 = vmatpush1.msra.mxu0 0.0
        %295 = vmatprep.subr.mxu0 0.0
        %296 = vmatpush1.msra.mxu0 0.0
        %297 = vmatprep.subr.mxu0 0.0
        %298 = vmatpush1.msra.mxu0 0.0
        %299 = vmatprep.subr.mxu0 0.0
        %300 = vmatpush1.msra.mxu0 0.0
        %301 = vmatprep.subr.mxu0 0.0
        %302 = vmatpush1.msra.mxu0 0.0
        %303 = vmatprep.subr.mxu0 0.0
        %304 = vmatpush1.msra.mxu0 0.0
        %305 = vmatprep.subr.mxu0 0.0
        %306 = vmatpush1.msra.mxu0 0.0
        %307 = vmatprep.subr.mxu0 0.0
        %308 = vmatpush1.msra.mxu0 0.0
        %309 = vmatprep.subr.mxu0 0.0
        %310 = vmatpush1.msra.mxu0 0.0
        %311 = vmatprep.subr.mxu0 0.0
        %312 = vmatpush1.msra.mxu0 0.0
        %313 = vmatprep.subr.mxu0 0.0
        %314 = vmatpush1.msra.mxu0 0.0
        %315 = vmatprep.subr.mxu0 0.0
        %316 = vmatpush1.msra.mxu0 0.0
        %317 = vmatprep.subr.mxu0 0.0
        %318 = vmatpush1.msra.mxu0 0.0
        %319 = vmatprep.subr.mxu0 0.0
        %320 = vmatpush1.msra.mxu0 0.0
        %321 = vmatprep.subr.mxu0 0.0
        %322 = vmatpush1.msra.mxu0 0.0
        %323 = vmatprep.subr.mxu0 0.0
        %324 = vmatpush1.msra.mxu0 0.0
        %325 = vmatprep.subr.mxu0 0.0
        %326 = vmatpush1.msra.mxu0 0.0
        %327 = vmatprep.subr.mxu0 0.0
        %328 = vmatpush1.msra.mxu0 0.0
        %329 = vmatprep.subr.mxu0 0.0
        %330 = vmatpush1.msra.mxu0 0.0
        %331 = vmatprep.subr.mxu0 0.0
        %332 = vmatpush1.msra.mxu0 0.0
        %333 = vmatprep.subr.mxu0 0.0
        %334 = vmatpush1.msra.mxu0 0.0
        %335 = vmatprep.subr.mxu0 0.0
        %336 = vmatpush1.msra.mxu0 0.0
        %337 = vmatprep.mubr.f32.mxu0 0.0
        %338 = vmatmul.mubr.f32.gmra.mrb[0].mxu0 %v271
        %v339 = vpop.f32.mrb[0].mxu0
        %v340 = vadd.f32 0.0, %v339
        %v341 = vpop.f32.mrb[0].mxu0
        %v342 = vadd.f32 0.0, %v341
        %343 = vdwg.mxu0
        %v344 = vadd.f32 %v249, %v340
        %v345 = vadd.f32 %v250, %v342
        %s346 = scalar_lea.vmem %s1, 16
        %v347 = vld [vmem:[%s346] sm:$0xff]
        %348 = vrot.lane.b32.xlu0 %v251, 126
        %v349 = vpop.permute.xlu0 %348
        %350 = vrot.lane.b32.xlu0 %v252, 126
        %v351 = vpop.permute.xlu0 %350
        %352 = vrot.lane.b32.xlu0 %v253, 126
        %v353 = vpop.permute.xlu0 %352
        %vm354 = vcmask 1031168
        %v355 = vsel %vm354, %v349, %v351
        %v356 = vsel %vm354, %v351, %v353
        %v360 = vsel %vm174, %v347, 0
        %362 = vmatprep.subr.mxu0 %v356
        %363 = vmatpush1.msra.mxu0 %v355
        %364 = vmatprep.subr.mxu0 0.0
        %365 = vmatpush1.msra.mxu0 0.0
        %366 = vmatprep.subr.mxu0 0.0
        %367 = vmatpush1.msra.mxu0 0.0
        %368 = vmatprep.subr.mxu0 0.0
        %369 = vmatpush1.msra.mxu0 0.0
        %370 = vmatprep.subr.mxu0 0.0
        %371 = vmatpush1.msra.mxu0 0.0
        %372 = vmatprep.subr.mxu0 0.0
        %373 = vmatpush1.msra.mxu0 0.0
        %374 = vmatprep.subr.mxu0 0.0
        %375 = vmatpush1.msra.mxu0 0.0
        %376 = vmatprep.subr.mxu0 0.0
        %377 = vmatpush1.msra.mxu0 0.0
        %378 = vmatprep.subr.mxu0 0.0
        %379 = vmatpush1.msra.mxu0 0.0
        %380 = vmatprep.subr.mxu0 0.0
        %381 = vmatpush1.msra.mxu0 0.0
        %382 = vmatprep.subr.mxu0 0.0
        %383 = vmatpush1.msra.mxu0 0.0
        %384 = vmatprep.subr.mxu0 0.0
        %385 = vmatpush1.msra.mxu0 0.0
        %386 = vmatprep.subr.mxu0 0.0
        %387 = vmatpush1.msra.mxu0 0.0
        %388 = vmatprep.subr.mxu0 0.0
        %389 = vmatpush1.msra.mxu0 0.0
        %390 = vmatprep.subr.mxu0 0.0
        %391 = vmatpush1.msra.mxu0 0.0
        %392 = vmatprep.subr.mxu0 0.0
        %393 = vmatpush1.msra.mxu0 0.0
        %394 = vmatprep.subr.mxu0 0.0
        %395 = vmatpush1.msra.mxu0 0.0
        %396 = vmatprep.subr.mxu0 0.0
        %397 = vmatpush1.msra.mxu0 0.0
        %398 = vmatprep.subr.mxu0 0.0
        %399 = vmatpush1.msra.mxu0 0.0
        %400 = vmatprep.subr.mxu0 0.0
        %401 = vmatpush1.msra.mxu0 0.0
        %402 = vmatprep.subr.mxu0 0.0
        %403 = vmatpush1.msra.mxu0 0.0
        %404 = vmatprep.subr.mxu0 0.0
        %405 = vmatpush1.msra.mxu0 0.0
        %406 = vmatprep.subr.mxu0 0.0
        %407 = vmatpush1.msra.mxu0 0.0
        %408 = vmatprep.subr.mxu0 0.0
        %409 = vmatpush1.msra.mxu0 0.0
        %410 = vmatprep.subr.mxu0 0.0
        %411 = vmatpush1.msra.mxu0 0.0
        %412 = vmatprep.subr.mxu0 0.0
        %413 = vmatpush1.msra.mxu0 0.0
        %414 = vmatprep.subr.mxu0 0.0
        %415 = vmatpush1.msra.mxu0 0.0
        %416 = vmatprep.subr.mxu0 0.0
        %417 = vmatpush1.msra.mxu0 0.0
        %418 = vmatprep.subr.mxu0 0.0
        %419 = vmatpush1.msra.mxu0 0.0
        %420 = vmatprep.subr.mxu0 0.0
        %421 = vmatpush1.msra.mxu0 0.0
        %422 = vmatprep.subr.mxu0 0.0
        %423 = vmatpush1.msra.mxu0 0.0
        %424 = vmatprep.subr.mxu0 0.0
        %425 = vmatpush1.msra.mxu0 0.0
        %426 = vmatprep.mubr.f32.mxu0 0.0
        %427 = vmatmul.mubr.f32.gmra.mrb[0].mxu0 %v360
        %v428 = vpop.f32.mrb[0].mxu0
        %v429 = vadd.f32 0.0, %v428
        %v430 = vpop.f32.mrb[0].mxu0
        %v431 = vadd.f32 0.0, %v430
        %432 = vdwg.mxu0
        %v433 = vadd.f32 %v344, %v429
        %v434 = vadd.f32 %v345, %v431
        %s435 = scalar_lea.vmem %s1, 24
        %v436 = vld [vmem:[%s435] sm:$0xff]
        %437 = vrot.lane.b32.xlu0 %v251, 112
        %v438 = vpop.permute.xlu0 %437
        %439 = vrot.lane.b32.xlu0 %v252, 112
        %v440 = vpop.permute.xlu0 %439
        %441 = vrot.lane.b32.xlu0 %v253, 112
        %v442 = vpop.permute.xlu0 %441
        %vm443 = vcmask 916480
        %v444 = vsel %vm443, %v438, %v440
        %v445 = vsel %vm443, %v440, %v442
        %v449 = vsel %vm174, %v436, 0
        %451 = vmatprep.subr.mxu0 %v445
        %452 = vmatpush1.msra.mxu0 %v444
        %453 = vmatprep.subr.mxu0 0.0
        %454 = vmatpush1.msra.mxu0 0.0
        %455 = vmatprep.subr.mxu0 0.0
        %456 = vmatpush1.msra.mxu0 0.0
        %457 = vmatprep.subr.mxu0 0.0
        %458 = vmatpush1.msra.mxu0 0.0
        %459 = vmatprep.subr.mxu0 0.0
        %460 = vmatpush1.msra.mxu0 0.0
        %461 = vmatprep.subr.mxu0 0.0
        %462 = vmatpush1.msra.mxu0 0.0
        %463 = vmatprep.subr.mxu0 0.0
        %464 = vmatpush1.msra.mxu0 0.0
        %465 = vmatprep.subr.mxu0 0.0
        %466 = vmatpush1.msra.mxu0 0.0
        %467 = vmatprep.subr.mxu0 0.0
        %468 = vmatpush1.msra.mxu0 0.0
        %469 = vmatprep.subr.mxu0 0.0
        %470 = vmatpush1.msra.mxu0 0.0
        %471 = vmatprep.subr.mxu0 0.0
        %472 = vmatpush1.msra.mxu0 0.0
        %473 = vmatprep.subr.mxu0 0.0
        %474 = vmatpush1.msra.mxu0 0.0
        %475 = vmatprep.subr.mxu0 0.0
        %476 = vmatpush1.msra.mxu0 0.0
        %477 = vmatprep.subr.mxu0 0.0
        %478 = vmatpush1.msra.mxu0 0.0
        %479 = vmatprep.subr.mxu0 0.0
        %480 = vmatpush1.msra.mxu0 0.0
        %481 = vmatprep.subr.mxu0 0.0
        %482 = vmatpush1.msra.mxu0 0.0
        %483 = vmatprep.subr.mxu0 0.0
        %484 = vmatpush1.msra.mxu0 0.0
        %485 = vmatprep.subr.mxu0 0.0
        %486 = vmatpush1.msra.mxu0 0.0
        %487 = vmatprep.subr.mxu0 0.0
        %488 = vmatpush1.msra.mxu0 0.0
        %489 = vmatprep.subr.mxu0 0.0
        %490 = vmatpush1.msra.mxu0 0.0
        %491 = vmatprep.subr.mxu0 0.0
        %492 = vmatpush1.msra.mxu0 0.0
        %493 = vmatprep.subr.mxu0 0.0
        %494 = vmatpush1.msra.mxu0 0.0
        %495 = vmatprep.subr.mxu0 0.0
        %496 = vmatpush1.msra.mxu0 0.0
        %497 = vmatprep.subr.mxu0 0.0
        %498 = vmatpush1.msra.mxu0 0.0
        %499 = vmatprep.subr.mxu0 0.0
        %500 = vmatpush1.msra.mxu0 0.0
        %501 = vmatprep.subr.mxu0 0.0
        %502 = vmatpush1.msra.mxu0 0.0
        %503 = vmatprep.subr.mxu0 0.0
        %504 = vmatpush1.msra.mxu0 0.0
        %505 = vmatprep.subr.mxu0 0.0
        %506 = vmatpush1.msra.mxu0 0.0
        %507 = vmatprep.subr.mxu0 0.0
        %508 = vmatpush1.msra.mxu0 0.0
        %509 = vmatprep.subr.mxu0 0.0
        %510 = vmatpush1.msra.mxu0 0.0
        %511 = vmatprep.subr.mxu0 0.0
        %512 = vmatpush1.msra.mxu0 0.0
        %513 = vmatprep.subr.mxu0 0.0
        %514 = vmatpush1.msra.mxu0 0.0
        %515 = vmatprep.mubr.f32.mxu0 0.0
        %516 = vmatmul.mubr.f32.gmra.mrb[0].mxu0 %v449
        %v517 = vpop.f32.mrb[0].mxu0
        %v518 = vadd.f32 0.0, %v517
        %v519 = vpop.f32.mrb[0].mxu0
        %v520 = vadd.f32 0.0, %v519
        %521 = vdwg.mxu0
        %v522 = vadd.f32 %v433, %v518
        %v523 = vadd.f32 %v434, %v520
        %s524 = scalar_lea.vmem %s1, 32
        %v525 = vld [vmem:[%s524] sm:$0xff]
        %526 = vrot.lane.b32.xlu0 %v251, 111
        %v527 = vpop.permute.xlu0 %526
        %528 = vrot.lane.b32.xlu0 %v252, 111
        %v529 = vpop.permute.xlu0 %528
        %530 = vrot.lane.b32.xlu0 %v253, 111
        %v531 = vpop.permute.xlu0 %530
        %vm532 = vcmask 908288
        %v533 = vsel %vm532, %v527, %v529
        %v534 = vsel %vm532, %v529, %v531
        %v538 = vsel %vm174, %v525, 0
        %540 = vmatprep.subr.mxu0 %v534
        %541 = vmatpush1.msra.mxu0 %v533
        %542 = vmatprep.subr.mxu0 0.0
        %543 = vmatpush1.msra.mxu0 0.0
        %544 = vmatprep.subr.mxu0 0.0
        %545 = vmatpush1.msra.mxu0 0.0
        %546 = vmatprep.subr.mxu0 0.0
        %547 = vmatpush1.msra.mxu0 0.0
        %548 = vmatprep.subr.mxu0 0.0
        %549 = vmatpush1.msra.mxu0 0.0
        %550 = vmatprep.subr.mxu0 0.0
        %551 = vmatpush1.msra.mxu0 0.0
        %552 = vmatprep.subr.mxu0 0.0
        %553 = vmatpush1.msra.mxu0 0.0
        %554 = vmatprep.subr.mxu0 0.0
        %555 = vmatpush1.msra.mxu0 0.0
        %556 = vmatprep.subr.mxu0 0.0
        %557 = vmatpush1.msra.mxu0 0.0
        %558 = vmatprep.subr.mxu0 0.0
        %559 = vmatpush1.msra.mxu0 0.0
        %560 = vmatprep.subr.mxu0 0.0
        %561 = vmatpush1.msra.mxu0 0.0
        %562 = vmatprep.subr.mxu0 0.0
        %563 = vmatpush1.msra.mxu0 0.0
        %564 = vmatprep.subr.mxu0 0.0
        %565 = vmatpush1.msra.mxu0 0.0
        %566 = vmatprep.subr.mxu0 0.0
        %567 = vmatpush1.msra.mxu0 0.0
        %568 = vmatprep.subr.mxu0 0.0
        %569 = vmatpush1.msra.mxu0 0.0
        %570 = vmatprep.subr.mxu0 0.0
        %571 = vmatpush1.msra.mxu0 0.0
        %572 = vmatprep.subr.mxu0 0.0
        %573 = vmatpush1.msra.mxu0 0.0
        %574 = vmatprep.subr.mxu0 0.0
        %575 = vmatpush1.msra.mxu0 0.0
        %576 = vmatprep.subr.mxu0 0.0
        %577 = vmatpush1.msra.mxu0 0.0
        %578 = vmatprep.subr.mxu0 0.0
        %579 = vmatpush1.msra.mxu0 0.0
        %580 = vmatprep.subr.mxu0 0.0
        %581 = vmatpush1.msra.mxu0 0.0
        %582 = vmatprep.subr.mxu0 0.0
        %583 = vmatpush1.msra.mxu0 0.0
        %584 = vmatprep.subr.mxu0 0.0
        %585 = vmatpush1.msra.mxu0 0.0
        %586 = vmatprep.subr.mxu0 0.0
        %587 = vmatpush1.msra.mxu0 0.0
        %588 = vmatprep.subr.mxu0 0.0
        %589 = vmatpush1.msra.mxu0 0.0
        %590 = vmatprep.subr.mxu0 0.0
        %591 = vmatpush1.msra.mxu0 0.0
        %592 = vmatprep.subr.mxu0 0.0
        %593 = vmatpush1.msra.mxu0 0.0
        %594 = vmatprep.subr.mxu0 0.0
        %595 = vmatpush1.msra.mxu0 0.0
        %596 = vmatprep.subr.mxu0 0.0
        %597 = vmatpush1.msra.mxu0 0.0
        %598 = vmatprep.subr.mxu0 0.0
        %599 = vmatpush1.msra.mxu0 0.0
        %600 = vmatprep.subr.mxu0 0.0
        %601 = vmatpush1.msra.mxu0 0.0
        %602 = vmatprep.subr.mxu0 0.0
        %603 = vmatpush1.msra.mxu0 0.0
        %604 = vmatprep.mubr.f32.mxu0 0.0
        %605 = vmatmul.mubr.f32.gmra.mrb[0].mxu0 %v538
        %v606 = vpop.f32.mrb[0].mxu0
        %v607 = vadd.f32 0.0, %v606
        %v608 = vpop.f32.mrb[0].mxu0
        %v609 = vadd.f32 0.0, %v608
        %610 = vdwg.mxu0
        %v611 = vadd.f32 %v522, %v607
        %v612 = vadd.f32 %v523, %v609
        %s613 = scalar_lea.vmem %s1, 40
        %v614 = vld [vmem:[%s613] sm:$0xff]
        %615 = vrot.lane.b32.xlu0 %v251, 110
        %v616 = vpop.permute.xlu0 %615
        %617 = vrot.lane.b32.xlu0 %v252, 110
        %v618 = vpop.permute.xlu0 %617
        %619 = vrot.lane.b32.xlu0 %v253, 110
        %v620 = vpop.permute.xlu0 %619
        %vm621 = vcmask 900096
        %v622 = vsel %vm621, %v616, %v618
        %v623 = vsel %vm621, %v618, %v620
        %v627 = vsel %vm174, %v614, 0
        %629 = vmatprep.subr.mxu0 %v623
        %630 = vmatpush1.msra.mxu0 %v622
        %631 = vmatprep.subr.mxu0 0.0
        %632 = vmatpush1.msra.mxu0 0.0
        %633 = vmatprep.subr.mxu0 0.0
        %634 = vmatpush1.msra.mxu0 0.0
        %635 = vmatprep.subr.mxu0 0.0
        %636 = vmatpush1.msra.mxu0 0.0
        %637 = vmatprep.subr.mxu0 0.0
        %638 = vmatpush1.msra.mxu0 0.0
        %639 = vmatprep.subr.mxu0 0.0
        %640 = vmatpush1.msra.mxu0 0.0
        %641 = vmatprep.subr.mxu0 0.0
        %642 = vmatpush1.msra.mxu0 0.0
        %643 = vmatprep.subr.mxu0 0.0
        %644 = vmatpush1.msra.mxu0 0.0
        %645 = vmatprep.subr.mxu0 0.0
        %646 = vmatpush1.msra.mxu0 0.0
        %647 = vmatprep.subr.mxu0 0.0
        %648 = vmatpush1.msra.mxu0 0.0
        %649 = vmatprep.subr.mxu0 0.0
        %650 = vmatpush1.msra.mxu0 0.0
        %651 = vmatprep.subr.mxu0 0.0
        %652 = vmatpush1.msra.mxu0 0.0
        %653 = vmatprep.subr.mxu0 0.0
        %654 = vmatpush1.msra.mxu0 0.0
        %655 = vmatprep.subr.mxu0 0.0
        %656 = vmatpush1.msra.mxu0 0.0
        %657 = vmatprep.subr.mxu0 0.0
        %658 = vmatpush1.msra.mxu0 0.0
        %659 = vmatprep.subr.mxu0 0.0
        %660 = vmatpush1.msra.mxu0 0.0
        %661 = vmatprep.subr.mxu0 0.0
        %662 = vmatpush1.msra.mxu0 0.0
        %663 = vmatprep.subr.mxu0 0.0
        %664 = vmatpush1.msra.mxu0 0.0
        %665 = vmatprep.subr.mxu0 0.0
        %666 = vmatpush1.msra.mxu0 0.0
        %667 = vmatprep.subr.mxu0 0.0
        %668 = vmatpush1.msra.mxu0 0.0
        %669 = vmatprep.subr.mxu0 0.0
        %670 = vmatpush1.msra.mxu0 0.0
        %671 = vmatprep.subr.mxu0 0.0
        %672 = vmatpush1.msra.mxu0 0.0
        %673 = vmatprep.subr.mxu0 0.0
        %674 = vmatpush1.msra.mxu0 0.0
        %675 = vmatprep.subr.mxu0 0.0
        %676 = vmatpush1.msra.mxu0 0.0
        %677 = vmatprep.subr.mxu0 0.0
        %678 = vmatpush1.msra.mxu0 0.0
        %679 = vmatprep.subr.mxu0 0.0
        %680 = vmatpush1.msra.mxu0 0.0
        %681 = vmatprep.subr.mxu0 0.0
        %682 = vmatpush1.msra.mxu0 0.0
        %683 = vmatprep.subr.mxu0 0.0
        %684 = vmatpush1.msra.mxu0 0.0
        %685 = vmatprep.subr.mxu0 0.0
        %686 = vmatpush1.msra.mxu0 0.0
        %687 = vmatprep.subr.mxu0 0.0
        %688 = vmatpush1.msra.mxu0 0.0
        %689 = vmatprep.subr.mxu0 0.0
        %690 = vmatpush1.msra.mxu0 0.0
        %691 = vmatprep.subr.mxu0 0.0
        %692 = vmatpush1.msra.mxu0 0.0
        %693 = vmatprep.mubr.f32.mxu0 0.0
        %694 = vmatmul.mubr.f32.gmra.mrb[0].mxu0 %v627
        %v695 = vpop.f32.mrb[0].mxu0
        %v696 = vadd.f32 0.0, %v695
        %v697 = vpop.f32.mrb[0].mxu0
        %v698 = vadd.f32 0.0, %v697
        %699 = vdwg.mxu0
        %v700 = vadd.f32 %v611, %v696
        %v701 = vadd.f32 %v612, %v698
        %s702 = scalar_lea.vmem %s1, 48
        %v703 = vld [vmem:[%s702] sm:$0xff]
        %704 = vrot.lane.b32.xlu0 %v251, 96
        %v705 = vpop.permute.xlu0 %704
        %706 = vrot.lane.b32.xlu0 %v252, 96
        %v707 = vpop.permute.xlu0 %706
        %708 = vrot.lane.b32.xlu0 %v253, 96
        %v709 = vpop.permute.xlu0 %708
        %vm710 = vcmask 785408
        %v711 = vsel %vm710, %v705, %v707
        %v712 = vsel %vm710, %v707, %v709
        %v716 = vsel %vm174, %v703, 0
        %718 = vmatprep.subr.mxu0 %v712
        %719 = vmatpush1.msra.mxu0 %v711
        %720 = vmatprep.subr.mxu0 0.0
        %721 = vmatpush1.msra.mxu0 0.0
        %722 = vmatprep.subr.mxu0 0.0
        %723 = vmatpush1.msra.mxu0 0.0
        %724 = vmatprep.subr.mxu0 0.0
        %725 = vmatpush1.msra.mxu0 0.0
        %726 = vmatprep.subr.mxu0 0.0
        %727 = vmatpush1.msra.mxu0 0.0
        %728 = vmatprep.subr.mxu0 0.0
        %729 = vmatpush1.msra.mxu0 0.0
        %730 = vmatprep.subr.mxu0 0.0
        %731 = vmatpush1.msra.mxu0 0.0
        %732 = vmatprep.subr.mxu0 0.0
        %733 = vmatpush1.msra.mxu0 0.0
        %734 = vmatprep.subr.mxu0 0.0
        %735 = vmatpush1.msra.mxu0 0.0
        %736 = vmatprep.subr.mxu0 0.0
        %737 = vmatpush1.msra.mxu0 0.0
        %738 = vmatprep.subr.mxu0 0.0
        %739 = vmatpush1.msra.mxu0 0.0
        %740 = vmatprep.subr.mxu0 0.0
        %741 = vmatpush1.msra.mxu0 0.0
        %742 = vmatprep.subr.mxu0 0.0
        %743 = vmatpush1.msra.mxu0 0.0
        %744 = vmatprep.subr.mxu0 0.0
        %745 = vmatpush1.msra.mxu0 0.0
        %746 = vmatprep.subr.mxu0 0.0
        %747 = vmatpush1.msra.mxu0 0.0
        %748 = vmatprep.subr.mxu0 0.0
        %749 = vmatpush1.msra.mxu0 0.0
        %750 = vmatprep.subr.mxu0 0.0
        %751 = vmatpush1.msra.mxu0 0.0
        %752 = vmatprep.subr.mxu0 0.0
        %753 = vmatpush1.msra.mxu0 0.0
        %754 = vmatprep.subr.mxu0 0.0
        %755 = vmatpush1.msra.mxu0 0.0
        %756 = vmatprep.subr.mxu0 0.0
        %757 = vmatpush1.msra.mxu0 0.0
        %758 = vmatprep.subr.mxu0 0.0
        %759 = vmatpush1.msra.mxu0 0.0
        %760 = vmatprep.subr.mxu0 0.0
        %761 = vmatpush1.msra.mxu0 0.0
        %762 = vmatprep.subr.mxu0 0.0
        %763 = vmatpush1.msra.mxu0 0.0
        %764 = vmatprep.subr.mxu0 0.0
        %765 = vmatpush1.msra.mxu0 0.0
        %766 = vmatprep.subr.mxu0 0.0
        %767 = vmatpush1.msra.mxu0 0.0
        %768 = vmatprep.subr.mxu0 0.0
        %769 = vmatpush1.msra.mxu0 0.0
        %770 = vmatprep.subr.mxu0 0.0
        %771 = vmatpush1.msra.mxu0 0.0
        %772 = vmatprep.subr.mxu0 0.0
        %773 = vmatpush1.msra.mxu0 0.0
        %774 = vmatprep.subr.mxu0 0.0
        %775 = vmatpush1.msra.mxu0 0.0
        %776 = vmatprep.subr.mxu0 0.0
        %777 = vmatpush1.msra.mxu0 0.0
        %778 = vmatprep.subr.mxu0 0.0
        %779 = vmatpush1.msra.mxu0 0.0
        %780 = vmatprep.subr.mxu0 0.0
        %781 = vmatpush1.msra.mxu0 0.0
        %782 = vmatprep.mubr.f32.mxu0 0.0
        %783 = vmatmul.mubr.f32.gmra.mrb[0].mxu0 %v716
        %v784 = vpop.f32.mrb[0].mxu0
        %v785 = vadd.f32 0.0, %v784
        %v786 = vpop.f32.mrb[0].mxu0
        %v787 = vadd.f32 0.0, %v786
        %788 = vdwg.mxu0
        %v789 = vadd.f32 %v700, %v785
        %v790 = vadd.f32 %v701, %v787
        %s791 = scalar_lea.vmem %s1, 56
        %v792 = vld [vmem:[%s791] sm:$0xff]
        %793 = vrot.lane.b32.xlu0 %v251, 95
        %v794 = vpop.permute.xlu0 %793
        %795 = vrot.lane.b32.xlu0 %v252, 95
        %v796 = vpop.permute.xlu0 %795
        %797 = vrot.lane.b32.xlu0 %v253, 95
        %v798 = vpop.permute.xlu0 %797
        %vm799 = vcmask 777216
        %v800 = vsel %vm799, %v794, %v796
        %v801 = vsel %vm799, %v796, %v798
        %v805 = vsel %vm174, %v792, 0
        %807 = vmatprep.subr.mxu0 %v801
        %808 = vmatpush1.msra.mxu0 %v800
        %809 = vmatprep.subr.mxu0 0.0
        %810 = vmatpush1.msra.mxu0 0.0
        %811 = vmatprep.subr.mxu0 0.0
        %812 = vmatpush1.msra.mxu0 0.0
        %813 = vmatprep.subr.mxu0 0.0
        %814 = vmatpush1.msra.mxu0 0.0
        %815 = vmatprep.subr.mxu0 0.0
        %816 = vmatpush1.msra.mxu0 0.0
        %817 = vmatprep.subr.mxu0 0.0
        %818 = vmatpush1.msra.mxu0 0.0
        %819 = vmatprep.subr.mxu0 0.0
        %820 = vmatpush1.msra.mxu0 0.0
        %821 = vmatprep.subr.mxu0 0.0
        %822 = vmatpush1.msra.mxu0 0.0
        %823 = vmatprep.subr.mxu0 0.0
        %824 = vmatpush1.msra.mxu0 0.0
        %825 = vmatprep.subr.mxu0 0.0
        %826 = vmatpush1.msra.mxu0 0.0
        %827 = vmatprep.subr.mxu0 0.0
        %828 = vmatpush1.msra.mxu0 0.0
        %829 = vmatprep.subr.mxu0 0.0
        %830 = vmatpush1.msra.mxu0 0.0
        %831 = vmatprep.subr.mxu0 0.0
        %832 = vmatpush1.msra.mxu0 0.0
        %833 = vmatprep.subr.mxu0 0.0
        %834 = vmatpush1.msra.mxu0 0.0
        %835 = vmatprep.subr.mxu0 0.0
        %836 = vmatpush1.msra.mxu0 0.0
        %837 = vmatprep.subr.mxu0 0.0
        %838 = vmatpush1.msra.mxu0 0.0
        %839 = vmatprep.subr.mxu0 0.0
        %840 = vmatpush1.msra.mxu0 0.0
        %841 = vmatprep.subr.mxu0 0.0
        %842 = vmatpush1.msra.mxu0 0.0
        %843 = vmatprep.subr.mxu0 0.0
        %844 = vmatpush1.msra.mxu0 0.0
        %845 = vmatprep.subr.mxu0 0.0
        %846 = vmatpush1.msra.mxu0 0.0
        %847 = vmatprep.subr.mxu0 0.0
        %848 = vmatpush1.msra.mxu0 0.0
        %849 = vmatprep.subr.mxu0 0.0
        %850 = vmatpush1.msra.mxu0 0.0
        %851 = vmatprep.subr.mxu0 0.0
        %852 = vmatpush1.msra.mxu0 0.0
        %853 = vmatprep.subr.mxu0 0.0
        %854 = vmatpush1.msra.mxu0 0.0
        %855 = vmatprep.subr.mxu0 0.0
        %856 = vmatpush1.msra.mxu0 0.0
        %857 = vmatprep.subr.mxu0 0.0
        %858 = vmatpush1.msra.mxu0 0.0
        %859 = vmatprep.subr.mxu0 0.0
        %860 = vmatpush1.msra.mxu0 0.0
        %861 = vmatprep.subr.mxu0 0.0
        %862 = vmatpush1.msra.mxu0 0.0
        %863 = vmatprep.subr.mxu0 0.0
        %864 = vmatpush1.msra.mxu0 0.0
        %865 = vmatprep.subr.mxu0 0.0
        %866 = vmatpush1.msra.mxu0 0.0
        %867 = vmatprep.subr.mxu0 0.0
        %868 = vmatpush1.msra.mxu0 0.0
        %869 = vmatprep.subr.mxu0 0.0
        %870 = vmatpush1.msra.mxu0 0.0
        %871 = vmatprep.mubr.f32.mxu0 0.0
        %872 = vmatmul.mubr.f32.gmra.mrb[0].mxu0 %v805
        %v873 = vpop.f32.mrb[0].mxu0
        %v874 = vadd.f32 0.0, %v873
        %v875 = vpop.f32.mrb[0].mxu0
        %v876 = vadd.f32 0.0, %v875
        %877 = vdwg.mxu0
        %v878 = vadd.f32 %v789, %v874
        %v879 = vadd.f32 %v790, %v876
        %s880 = scalar_lea.vmem %s1, 64
        %v881 = vld [vmem:[%s880] sm:$0xff]
        %882 = vrot.lane.b32.xlu0 %v251, 94
        %v883 = vpop.permute.xlu0 %882
        %884 = vrot.lane.b32.xlu0 %v252, 94
        %v885 = vpop.permute.xlu0 %884
        %886 = vrot.lane.b32.xlu0 %v253, 94
        %v887 = vpop.permute.xlu0 %886
        %vm888 = vcmask 769024
        %v889 = vsel %vm888, %v883, %v885
        %v890 = vsel %vm888, %v885, %v887
        %v894 = vsel %vm174, %v881, 0
        %896 = vmatprep.subr.mxu0 %v890
        %897 = vmatpush1.msra.mxu0 %v889
        %898 = vmatprep.subr.mxu0 0.0
        %899 = vmatpush1.msra.mxu0 0.0
        %900 = vmatprep.subr.mxu0 0.0
        %901 = vmatpush1.msra.mxu0 0.0
        %902 = vmatprep.subr.mxu0 0.0
        %903 = vmatpush1.msra.mxu0 0.0
        %904 = vmatprep.subr.mxu0 0.0
        %905 = vmatpush1.msra.mxu0 0.0
        %906 = vmatprep.subr.mxu0 0.0
        %907 = vmatpush1.msra.mxu0 0.0
        %908 = vmatprep.subr.mxu0 0.0
        %909 = vmatpush1.msra.mxu0 0.0
        %910 = vmatprep.subr.mxu0 0.0
        %911 = vmatpush1.msra.mxu0 0.0
        %912 = vmatprep.subr.mxu0 0.0
        %913 = vmatpush1.msra.mxu0 0.0
        %914 = vmatprep.subr.mxu0 0.0
        %915 = vmatpush1.msra.mxu0 0.0
        %916 = vmatprep.subr.mxu0 0.0
        %917 = vmatpush1.msra.mxu0 0.0
        %918 = vmatprep.subr.mxu0 0.0
        %919 = vmatpush1.msra.mxu0 0.0
        %920 = vmatprep.subr.mxu0 0.0
        %921 = vmatpush1.msra.mxu0 0.0
        %922 = vmatprep.subr.mxu0 0.0
        %923 = vmatpush1.msra.mxu0 0.0
        %924 = vmatprep.subr.mxu0 0.0
        %925 = vmatpush1.msra.mxu0 0.0
        %926 = vmatprep.subr.mxu0 0.0
        %927 = vmatpush1.msra.mxu0 0.0
        %928 = vmatprep.subr.mxu0 0.0
        %929 = vmatpush1.msra.mxu0 0.0
        %930 = vmatprep.subr.mxu0 0.0
        %931 = vmatpush1.msra.mxu0 0.0
        %932 = vmatprep.subr.mxu0 0.0
        %933 = vmatpush1.msra.mxu0 0.0
        %934 = vmatprep.subr.mxu0 0.0
        %935 = vmatpush1.msra.mxu0 0.0
        %936 = vmatprep.subr.mxu0 0.0
        %937 = vmatpush1.msra.mxu0 0.0
        %938 = vmatprep.subr.mxu0 0.0
        %939 = vmatpush1.msra.mxu0 0.0
        %940 = vmatprep.subr.mxu0 0.0
        %941 = vmatpush1.msra.mxu0 0.0
        %942 = vmatprep.subr.mxu0 0.0
        %943 = vmatpush1.msra.mxu0 0.0
        %944 = vmatprep.subr.mxu0 0.0
        %945 = vmatpush1.msra.mxu0 0.0
        %946 = vmatprep.subr.mxu0 0.0
        %947 = vmatpush1.msra.mxu0 0.0
        %948 = vmatprep.subr.mxu0 0.0
        %949 = vmatpush1.msra.mxu0 0.0
        %950 = vmatprep.subr.mxu0 0.0
        %951 = vmatpush1.msra.mxu0 0.0
        %952 = vmatprep.subr.mxu0 0.0
        %953 = vmatpush1.msra.mxu0 0.0
        %954 = vmatprep.subr.mxu0 0.0
        %955 = vmatpush1.msra.mxu0 0.0
        %956 = vmatprep.subr.mxu0 0.0
        %957 = vmatpush1.msra.mxu0 0.0
        %958 = vmatprep.subr.mxu0 0.0
        %959 = vmatpush1.msra.mxu0 0.0
        %960 = vmatprep.mubr.f32.mxu0 0.0
        %961 = vmatmul.mubr.f32.gmra.mrb[0].mxu0 %v894
        %v962 = vpop.f32.mrb[0].mxu0
        %v963 = vadd.f32 0.0, %v962
        %v964 = vpop.f32.mrb[0].mxu0
        %v965 = vadd.f32 0.0, %v964
        %966 = vdwg.mxu0
        %v967 = vadd.f32 %v878, %v963
        %v968 = vadd.f32 %v879, %v965
        %969 = vst [vmem:[%s163] sm:$0xff] %v967
        %970 = vst [vmem:[%s163 + $0x8] sm:$0xff] %v968
        %s971 = sand.u32 %s93, 1
        %s972 = scalar_lea.sflag [#allocation3], %s971
        %s973 = sand.u32 %s93, 1
        %s974 = smul.addr %s973, 16
        %s975 = scalar_lea.vmem [#allocation2], %s974
        // Predicated region
        $region33: #{tpu_custom_call.1} parent=31 // pred_check
          %p976 = pneg %p103
        $region34: #{tpu_custom_call.1} parent=31 // pred_check_branch
          %978 = sbr.rel (%p976) target = $region36
        $region35: #{tpu_custom_call.1} parent=31 // pred_region
          %s980 = ssub.s32 256, 256
          %981 = vsyncadd %s972, %s980
          %s982 = smul.addr %s17, 2
          %s983 = smul.addr %s982, 128
          %s984 = scalar_lea.hbm %s3, %s983
          %s986 = sshll.u32 %s975, 4
          %s987 = int_to_ptr.vmem [resolvable:$true] %s986
          %989 = dma.vmem_to_hbm [thread:$0]  %s987, 256, %s984, %s972
        $region36: #{tpu_custom_call.1} parent=31 // pred_fallthru
          _
      $region32: #{tpu_custom_call.1} parent=5 // pred_fallthru
        _
      %p990 = scmp.le.s32.totalorder 2, %s12
      // Predicated region
      $region37: #{tpu_custom_call.1} parent=5 // pred_check
        %p991 = pneg %p990
      $region38: #{tpu_custom_call.1} parent=5 // pred_check_branch
        %993 = sbr.rel (%p991) target = $region40
      $region39: #{tpu_custom_call.1} parent=5 // pred_region
        %s994 = ssub.s32 %s12, 2
        // Predicated region
        $region41: #{tpu_custom_call.1} parent=39 // pred_check
          %p995 = pneg %p109
        $region42: #{tpu_custom_call.1} parent=39 // pred_check_branch
          %997 = sbr.rel (%p995) target = $region44
        $region43: #{tpu_custom_call.1} parent=39 // pred_region
          %s998 = sand.u32 %s94, 1
          %s999 = scalar_lea.sflag [#allocation3], %s998
          %s1000 = sand.u32 %s94, 1
          %s1001 = smul.addr %s1000, 16
          %s1002 = scalar_lea.vmem [#allocation2], %s1001
          %1003 = dma.done %s999, 256
        $region44: #{tpu_custom_call.1} parent=39 // pred_fallthru
          _
      $region40: #{tpu_custom_call.1} parent=5 // pred_fallthru
        _
    $region6: #{tpu_custom_call.1} parent=1 // loop_footer
      %s16 = sadd.s32 1, %s12
    $region7: #{tpu_custom_call.1} parent=1 // loop_footer_branch
      %11 = sbr.rel target = $region3
    $region8: #{tpu_custom_call.1} parent=1 // loop_exit
      _
    %1004 = vsyncpa [#allocation3], 1
    %s1005 = scalar_lea.sflag [#allocation3], 1
    %1006 = vsyncpa %s1005, 1

</llo_original>
